<compile_context>
chip_gen: v7x
topology: tpu7x:2x2x1
jax: 0.10.0
libtpu: 0.0.40
codegen_flags: <defaults>
</compile_context>

<pallas_src>
import functools

import jax
import jax.numpy as jnp
from jax.experimental import pallas as pl
from jax.experimental.pallas import tpu as pltpu


def _epe_partial_kernel(out_ref, tgt_ref, psum_ref, *, div_flow, hw, tile,
                        needs_mask):
    # out_ref/tgt_ref block: (1, C, tile); psum_ref block: (1, 1, 8, 128).
    o = out_ref[0].astype(jnp.float32)                 # (C, tile)
    g = tgt_ref[0].astype(jnp.float32)                 # (C, tile)
    d = o - jnp.float32(div_flow) * g                  # (C, tile)
    sq = jnp.sum(d * d, axis=0, keepdims=True)         # (1, tile) channel reduce
    epe = jnp.sqrt(sq)                                 # (1, tile)

    if needs_mask:
        # Zero out lanes past the true H*W extent in the (partial) last tile.
        t = pl.program_id(1)
        col = t * tile + jax.lax.broadcasted_iota(jnp.int32, epe.shape, 1)
        epe = jnp.where(col < hw, epe, 0.0)

    # Per-block partial sum; broadcast into a lane-dense (8,128) output slab so
    # the store is a full unmasked vreg and no carried state is needed.
    s = jnp.sum(epe)
    psum_ref[...] = jnp.broadcast_to(s, psum_ref.shape)


def ours_loss(output, target, div_flow=0.05, max_tile=65536):
    """EPE loss matching OursLoss.forward. output/target: NCHW float arrays."""
    assert output.shape == target.shape, (output.shape, target.shape)
    B, C, H, W = output.shape
    HW = H * W
    n = B * HW

    # Free views: NCHW -> (B, C, H*W). No transpose, no pad, no extra HBM pass.
    out3 = output.reshape(B, C, HW)
    tgt3 = target.reshape(B, C, HW)

    # Tile selection: full spatial extent if it fits (always legal), otherwise
    # a large multiple of 128 lanes; ragged tail handled by in-kernel mask.
    max_tile = max(128, (max_tile // 128) * 128)
    if HW <= max_tile:
        tile = HW
    else:
        tile = max_tile
    nt = pl.cdiv(HW, tile)
    needs_mask = (HW % tile) != 0

    kernel = functools.partial(
        _epe_partial_kernel,
        div_flow=float(div_flow),
        hw=HW,
        tile=tile,
        needs_mask=needs_mask,
    )

    cost = pl.CostEstimate(
        flops=5 * C * n,                                   # sub/mul/square/add
        transcendentals=n,                                 # sqrt per pixel
        bytes_accessed=2 * C * n * 4 + B * nt * 8 * 128 * 4,
    )

    partials = pl.pallas_call(
        kernel,
        out_shape=jax.ShapeDtypeStruct((B, nt, 8, 128), jnp.float32),
        grid_spec=pltpu.PrefetchScalarGridSpec(
            num_scalar_prefetch=0,
            grid=(B, nt),
            in_specs=[
                pl.BlockSpec((1, C, tile), lambda b, t: (b, 0, t)),
                pl.BlockSpec((1, C, tile), lambda b, t: (b, 0, t)),
            ],
            out_specs=pl.BlockSpec((1, 1, 8, 128), lambda b, t: (b, t, 0, 0)),
        ),
        compiler_params=pltpu.CompilerParams(
            dimension_semantics=("parallel", "parallel"),
            vmem_limit_bytes=32 * 1024 * 1024,
        ),
        cost_estimate=cost,
    )(out3, tgt3)

    # Tiny epilogue: one value per (batch, tile) block -> mean over all pixels.
    epevalue = jnp.sum(partials[:, :, 0, 0]) / jnp.float32(n)
    return [epevalue]  # mirror the module's list return


def _reference(output, target, div_flow=0.05):
    target = div_flow * target
    diff = output - target
    epe = jnp.sqrt(jnp.sum(diff * diff, axis=1))  # norm over channel dim
    return jnp.mean(epe)


if __name__ == "__main__":
    key = jax.random.PRNGKey(0)
    k1, k2 = jax.random.split(key)

    # Flow-like shapes: batch=2, channels=2 (flow u, v), 16x16 spatial.
    B, C, H, W = 2, 2, 16, 16
    output = jax.random.normal(k1, (B, C, H, W), dtype=jnp.float32)
    target = jax.random.normal(k2, (B, C, H, W), dtype=jnp.float32)

    loss = ours_loss(output, target)[0]
    jax.block_until_ready(loss)
    ref = _reference(output, target)
    assert jnp.allclose(loss, ref, rtol=1e-5, atol=1e-6), (loss, ref)

    # Multi-tile + ragged-tail path (HW not a multiple of the lane tile).
    k3, k4 = jax.random.split(k1)
    B2, C2, H2, W2 = 1, 2, 10, 18          # HW = 180, tile = 128 -> partial tail
    out2 = jax.random.normal(k3, (B2, C2, H2, W2), dtype=jnp.float32)
    tgt2 = jax.random.normal(k4, (B2, C2, H2, W2), dtype=jnp.float32)
    loss2 = ours_loss(out2, tgt2, max_tile=128)[0]
    jax.block_until_ready(loss2)
    ref2 = _reference(out2, tgt2)
    assert jnp.allclose(loss2, ref2, rtol=1e-5, atol=1e-6), (loss2, ref2)

    print("KERNEL_OK")
</pallas_src>

<mosaic_0001>
module attributes {stable_mosaic.version = 11 : i64} {
  func.func @_epe_partial_kernel(%arg0: i32, %arg1: i32, %arg2: memref<1x2x256xf32, #tpu.memory_space<vmem>>, %arg3: memref<1x2x256xf32, #tpu.memory_space<vmem>>, %arg4: memref<1x1x8x128xf32, #tpu.memory_space<vmem>>) attributes {dimension_semantics = [#tpu.dimension_semantics<parallel>, #tpu.dimension_semantics<parallel>], iteration_bounds = array<i64: 2, 1>, scalar_prefetch = 0 : i64, scratch_operands = 0 : i64, tpu.core_type = #tpu.core_type<tc>, window_params = [{transform_indices = @transform_0, window_bounds = array<i64: 1, 2, 256>}, {transform_indices = @transform_1, window_bounds = array<i64: 1, 2, 256>}, {transform_indices = @transform_2, window_bounds = array<i64: 1, 1, 8, 128>}]} {
    %c0 = arith.constant 0 : index
    %c0_0 = arith.constant 0 : index
    %c0_1 = arith.constant 0 : index
    %0 = vector.load %arg2[%c0, %c0_0, %c0_1] : memref<1x2x256xf32, #tpu.memory_space<vmem>>, vector<1x2x256xf32>
    %1 = vector.shape_cast %0 : vector<1x2x256xf32> to vector<2x256xf32>
    %c0_2 = arith.constant 0 : index
    %c0_3 = arith.constant 0 : index
    %c0_4 = arith.constant 0 : index
    %2 = vector.load %arg3[%c0_2, %c0_3, %c0_4] : memref<1x2x256xf32, #tpu.memory_space<vmem>>, vector<1x2x256xf32>
    %3 = vector.shape_cast %2 : vector<1x2x256xf32> to vector<2x256xf32>
    %cst = arith.constant 5.000000e-02 : f32
    %4 = vector.broadcast %cst : f32 to vector<2x256xf32>
    %5 = arith.mulf %4, %3 : vector<2x256xf32>
    %6 = arith.subf %1, %5 : vector<2x256xf32>
    %7 = arith.mulf %6, %6 : vector<2x256xf32>
    %cst_5 = arith.constant dense<0.000000e+00> : vector<256xf32>
    %8 = vector.multi_reduction <add>, %7, %cst_5 [0] : vector<2x256xf32> to vector<256xf32>
    %9 = vector.shape_cast %8 : vector<256xf32> to vector<1x256xf32>
    %10 = math.sqrt %9 : vector<1x256xf32>
    %11 = vector.shape_cast %10 : vector<1x256xf32> to vector<1x1x256xf32>
    %cst_6 = arith.constant dense<0.000000e+00> : vector<1xf32>
    %12 = vector.multi_reduction <add>, %11, %cst_6 [1, 2] : vector<1x1x256xf32> to vector<1xf32>
    %13 = vector.shape_cast %12 : vector<1xf32> to vector<1x1x1xf32>
    %14 = vector.extract %13[0, 0, 0] : f32 from vector<1x1x1xf32>
    %15 = vector.broadcast %14 : f32 to vector<1x1x8x128xf32>
    %c0_7 = arith.constant 0 : index
    %c0_8 = arith.constant 0 : index
    %c0_9 = arith.constant 0 : index
    %c0_10 = arith.constant 0 : index
    %16 = vector.load %arg4[%c0_7, %c0_8, %c0_9, %c0_10] : memref<1x1x8x128xf32, #tpu.memory_space<vmem>>, vector<1x1x8x128xf32>
    tpu.vector_store %arg4[%c0_7, %c0_8, %c0_9, %c0_10], %15 {strides = array<i32>} : memref<1x1x8x128xf32, #tpu.memory_space<vmem>>, vector<1x1x8x128xf32>,
    return
  }
  func.func @transform_0(%arg0: i32, %arg1: i32) -> (i32, i32, i32) {
    %c0_i32 = arith.constant 0 : i32
    %c0_i32_0 = arith.constant 0 : i32
    return %arg0, %c0_i32, %arg1 : i32, i32, i32
  }
  func.func @transform_1(%arg0: i32, %arg1: i32) -> (i32, i32, i32) {
    %c0_i32 = arith.constant 0 : i32
    %c0_i32_0 = arith.constant 0 : i32
    return %arg0, %c0_i32, %arg1 : i32, i32, i32
  }
  func.func @transform_2(%arg0: i32, %arg1: i32) -> (i32, i32, i32, i32) {
    %c0_i32 = arith.constant 0 : i32
    %c0_i32_0 = arith.constant 0 : i32
    %c0_i32_1 = arith.constant 0 : i32
    return %arg0, %arg1, %c0_i32, %c0_i32_0 : i32, i32, i32, i32
  }
}

</mosaic_0001>

<llo_original>
// kernel: tpu_custom_call.1
$region0: #{tpu_custom_call.1}
  #allocation0 [shape = 'u32[]', space=smem, size = 0x4, offset = 0x4, fixed_abs, tag = 'smem constant byte address 0x4 - core index']
  #allocation1 [shape = 'u32[144,128]{1,0:T(1,128)}', space=vmem, size = 0x12000, scoped, tag = 'internal scratch']
  %s0 = inlined_call_operand.hbm [shape: f32[2,2,256], index: 0, kind: input, shape index: {}]
  %s1 = inlined_call_operand.hbm [shape: f32[2,2,256], index: 1, kind: input, shape index: {}]
  %s2 = inlined_call_operand.hbm [shape: f32[2,1,8,128], index: 2, kind: output, shape index: {}]
  %s3 = sld [smem:[#allocation0]]
  $region49: #{tpu_custom_call.1} parent=0
    _
  %s5 = ssub.s32 1, %s3
  %s6 = scalar_select 0, %s5, %s3
  $region1: #{tpu_custom_call.1} parent=0
    #allocation2 [shape = 'u8[4096]{0}', space=vmem, size = 0x1000, scoped, tag = 'input window, operand 0']
    #allocation3 [shape = 's32[2]{0}', space=sflag, size = 0x8, scoped, tag = 'scoped memory for tpu_custom_call.1']
    #allocation4 [shape = 's32[2]{0}', space=sflag, size = 0x8, scoped, tag = 'scoped memory for tpu_custom_call.1']
    #allocation5 [shape = 'u8[4096]{0}', space=vmem, size = 0x1000, scoped, tag = 'input window, operand 1']
    #allocation6 [shape = 's32[2]{0}', space=sflag, size = 0x8, scoped, tag = 'scoped memory for tpu_custom_call.1']
    #allocation7 [shape = 'u8[8192]{0}', space=vmem, size = 0x2000, scoped, tag = 'output window, operand 0']
    %7 = vsyncpa [#allocation3], 0
    %s8 = scalar_lea.sflag [#allocation3], 1
    %9 = vsyncpa %s8, 0
    %10 = vsyncpa [#allocation6], 0
    %s11 = scalar_lea.sflag [#allocation6], 1
    %12 = vsyncpa %s11, 0
    %13 = vsyncpa [#allocation4], 0
    %s14 = scalar_lea.sflag [#allocation4], 1
    %15 = vsyncpa %s14, 0
    loop: start=0, step=1, limit=4
    $region2: #{tpu_custom_call.1} parent=1 // loop_pre_header
      _
    $region3: #{tpu_custom_call.1} parent=1 // loop_header
      %s17 = sphi 0, %s21
      %p18 = scmp.ge.s32.totalorder %s17, 4
      %s24 = sphi 0, %s36
      %s25 = sphi 0, %s32
      %s26 = sphi 0, %s24
      %s27 = sphi 0, %s25
      %s28 = sphi 0, %s26
      %s29 = sphi 0, %s27
      %s41 = sphi 0, %s43
      %s44 = sphi 0, %s41
      %s45 = sphi 0, %s44
      %s61 = sphi 0, %s45
      %s69 = sphi 0, %s71
      %s72 = sphi 0, %s69
      %s73 = sphi 0, %s72
      %s89 = sphi 0, %s73
      %s97 = sphi 0, %s99
      %s100 = sphi 0, %s97
      %s101 = sphi 0, %s100
      %s117 = sphi 0, %s101
    $region4: #{tpu_custom_call.1} parent=1 // loop_header_branch
      %20 = sbr.rel (%p18) target = $region8
    $region5: #{tpu_custom_call.1} parent=1 // loop_body
      %s22 = ssub.s32 %s17, 1
      %s23 = ssub.s32 %s17, 2
      %s30 = sadd.s32 1, %s25
      %p31 = scmp.ge.s32.totalorder %s30, 1
      %s32 = scalar_select %p31, 0, %s30
      %s33 = sadd.s32 1, %s24
      %s34 = scalar_select %p31, %s33, %s24
      %p35 = scmp.ge.s32.totalorder %s34, 2
      %s36 = scalar_select %p35, 0, %s34
      %s37 = ssub.s32 %s24, %s36
      %s38 = ssub.s32 %s25, %s32
      %s39 = sor.u32 %s37, %s38
      %p40 = scmp.eq.s32.totalorder %s39, 0
      %s42 = sadd.s32 %s41, 1
      %s43 = scalar_select %p40, %s41, %s42
      %p46 = pneg %p40
      %p47 = scmp.eq.s32.totalorder %s17, 1
      %p48 = por %p46, %p47
      %p49 = scmp.ne.s32.totalorder %s41, %s44
      %p50 = scmp.eq.s32.totalorder %s17, 0
      %p51 = por %p49, %p50
      %p52 = scmp.ne.s32.totalorder %s41, %s44
      %p53 = scmp.eq.s32.totalorder %s22, 1
      %p54 = por %p52, %p53
      %p55 = scmp.ne.s32.totalorder %s44, %s45
      %p56 = scmp.eq.s32.totalorder %s22, 0
      %p57 = por %p55, %p56
      %p58 = scmp.ne.s32.totalorder %s44, %s45
      %p59 = scmp.eq.s32.totalorder %s23, 1
      %p60 = por %p58, %p59
      %p62 = scmp.ne.s32.totalorder %s45, %s61
      %p63 = scmp.eq.s32.totalorder %s23, 0
      %p64 = por %p62, %p63
      %s65 = ssub.s32 %s24, %s36
      %s66 = ssub.s32 %s25, %s32
      %s67 = sor.u32 %s65, %s66
      %p68 = scmp.eq.s32.totalorder %s67, 0
      %s70 = sadd.s32 %s69, 1
      %s71 = scalar_select %p68, %s69, %s70
      %p74 = pneg %p68
      %p75 = scmp.eq.s32.totalorder %s17, 1
      %p76 = por %p74, %p75
      %p77 = scmp.ne.s32.totalorder %s69, %s72
      %p78 = scmp.eq.s32.totalorder %s17, 0
      %p79 = por %p77, %p78
      %p80 = scmp.ne.s32.totalorder %s69, %s72
      %p81 = scmp.eq.s32.totalorder %s22, 1
      %p82 = por %p80, %p81
      %p83 = scmp.ne.s32.totalorder %s72, %s73
      %p84 = scmp.eq.s32.totalorder %s22, 0
      %p85 = por %p83, %p84
      %p86 = scmp.ne.s32.totalorder %s72, %s73
      %p87 = scmp.eq.s32.totalorder %s23, 1
      %p88 = por %p86, %p87
      %p90 = scmp.ne.s32.totalorder %s73, %s89
      %p91 = scmp.eq.s32.totalorder %s23, 0
      %p92 = por %p90, %p91
      %s93 = ssub.s32 %s24, %s36
      %s94 = ssub.s32 %s25, %s32
      %s95 = sor.u32 %s93, %s94
      %p96 = scmp.eq.s32.totalorder %s95, 0
      %s98 = sadd.s32 %s97, 1
      %s99 = scalar_select %p96, %s97, %s98
      %p102 = pneg %p96
      %p103 = scmp.eq.s32.totalorder %s17, 1
      %p104 = por %p102, %p103
      %p105 = scmp.ne.s32.totalorder %s97, %s100
      %p106 = scmp.eq.s32.totalorder %s17, 0
      %p107 = por %p105, %p106
      %p108 = scmp.ne.s32.totalorder %s97, %s100
      %p109 = scmp.eq.s32.totalorder %s22, 1
      %p110 = por %p108, %p109
      %p111 = scmp.ne.s32.totalorder %s100, %s101
      %p112 = scmp.eq.s32.totalorder %s22, 0
      %p113 = por %p111, %p112
      %p114 = scmp.ne.s32.totalorder %s100, %s101
      %p115 = scmp.eq.s32.totalorder %s23, 1
      %p116 = por %p114, %p115
      %p118 = scmp.ne.s32.totalorder %s101, %s117
      %p119 = scmp.eq.s32.totalorder %s23, 0
      %p120 = por %p118, %p119
      %p121 = scmp.le.s32.totalorder 1, %s17
      %p122 = scmp.lt.s32.totalorder %s17, 3
      %p123 = pnand %p121, %p122
      %p124 = pneg %p123
      // Predicated region
      $region9: #{tpu_custom_call.1} parent=5 // pred_check
        _
      $region10: #{tpu_custom_call.1} parent=5 // pred_check_branch
        %126 = sbr.rel (%p123) target = $region12
      $region11: #{tpu_custom_call.1} parent=5 // pred_region
        %s127 = ssub.s32 %s17, 1
      $region12: #{tpu_custom_call.1} parent=5 // pred_fallthru
        _
      %p128 = scmp.lt.s32.totalorder %s17, 2
      // Predicated region
      $region13: #{tpu_custom_call.1} parent=5 // pred_check
        %p129 = pneg %p128
      $region14: #{tpu_custom_call.1} parent=5 // pred_check_branch
        %131 = sbr.rel (%p129) target = $region16
      $region15: #{tpu_custom_call.1} parent=5 // pred_region
        // Predicated region
        $region17: #{tpu_custom_call.1} parent=15 // pred_check
          %p132 = pneg %p51
        $region18: #{tpu_custom_call.1} parent=15 // pred_check_branch
          %134 = sbr.rel (%p132) target = $region20
        $region19: #{tpu_custom_call.1} parent=15 // pred_region
          %s135 = sand.u32 %s41, 1
          %s136 = scalar_lea.sflag [#allocation3], %s135
          %s137 = sand.u32 %s41, 1
          %s138 = smul.addr %s137, 4
          %s139 = scalar_lea.vmem [#allocation2], %s138
          %s140 = smul.u32 2, %s25
          %s142 = ssub.s32 64, 64
          %143 = vsyncadd %s136, %s142
          %s144 = smul.addr %s24, 2
          %s145 = sadd.s32 %s140, %s144
          %s146 = smul.addr %s145, 32
          %s147 = scalar_lea.hbm %s0, %s146
          %s149 = sshll.u32 %s139, 4
          %s150 = int_to_ptr.vmem [resolvable:$true] %s149
          %152 = dma.hbm_to_vmem [thread:$0]  %s147, 64, %s150, %s136
        $region20: #{tpu_custom_call.1} parent=15 // pred_fallthru
          _
        // Predicated region
        $region21: #{tpu_custom_call.1} parent=15 // pred_check
          %p153 = pneg %p79
        $region22: #{tpu_custom_call.1} parent=15 // pred_check_branch
          %155 = sbr.rel (%p153) target = $region24
        $region23: #{tpu_custom_call.1} parent=15 // pred_region
          %s156 = sand.u32 %s69, 1
          %s157 = scalar_lea.sflag [#allocation6], %s156
          %s158 = sand.u32 %s69, 1
          %s159 = smul.addr %s158, 4
          %s160 = scalar_lea.vmem [#allocation5], %s159
          %s161 = smul.u32 2, %s25
          %s163 = ssub.s32 64, 64
          %164 = vsyncadd %s157, %s163
          %s165 = smul.addr %s24, 2
          %s166 = sadd.s32 %s161, %s165
          %s167 = smul.addr %s166, 32
          %s168 = scalar_lea.hbm %s1, %s167
          %s170 = sshll.u32 %s160, 4
          %s171 = int_to_ptr.vmem [resolvable:$true] %s170
          %173 = dma.hbm_to_vmem [thread:$0]  %s168, 64, %s171, %s157
        $region24: #{tpu_custom_call.1} parent=15 // pred_fallthru
          _
      $region16: #{tpu_custom_call.1} parent=5 // pred_fallthru
        _
      %p174 = scmp.le.s32.totalorder 1, %s17
      %p175 = scmp.lt.s32.totalorder %s17, 3
      %p176 = pnand %p174, %p175
      %p177 = pneg %p176
      // Predicated region
      $region25: #{tpu_custom_call.1} parent=5 // pred_check
        _
      $region26: #{tpu_custom_call.1} parent=5 // pred_check_branch
        %179 = sbr.rel (%p176) target = $region28
      $region27: #{tpu_custom_call.1} parent=5 // pred_region
        %s180 = ssub.s32 %s17, 1
        %s181 = sand.u32 %s44, 1
        %s182 = scalar_lea.sflag [#allocation3], %s181
        %s183 = sand.u32 %s44, 1
        %s184 = smul.addr %s183, 4
        %s185 = scalar_lea.vmem [#allocation2], %s184
        // Predicated region
        $region29: #{tpu_custom_call.1} parent=27 // pred_check
          %p186 = pneg %p57
        $region30: #{tpu_custom_call.1} parent=27 // pred_check_branch
          %188 = sbr.rel (%p186) target = $region32
        $region31: #{tpu_custom_call.1} parent=27 // pred_region
          %189 = dma.done %s182, 64
        $region32: #{tpu_custom_call.1} parent=27 // pred_fallthru
          _
        %s190 = sand.u32 %s72, 1
        %s191 = scalar_lea.sflag [#allocation6], %s190
        %s192 = sand.u32 %s72, 1
        %s193 = smul.addr %s192, 4
        %s194 = scalar_lea.vmem [#allocation5], %s193
        // Predicated region
        $region33: #{tpu_custom_call.1} parent=27 // pred_check
          %p195 = pneg %p85
        $region34: #{tpu_custom_call.1} parent=27 // pred_check_branch
          %197 = sbr.rel (%p195) target = $region36
        $region35: #{tpu_custom_call.1} parent=27 // pred_region
          %198 = dma.done %s191, 64
        $region36: #{tpu_custom_call.1} parent=27 // pred_fallthru
          _
        %s199 = sand.u32 %s44, 1
        %s200 = scalar_lea.sflag [#allocation3], %s199
        %s201 = sand.u32 %s44, 1
        %s202 = smul.addr %s201, 4
        %s203 = scalar_lea.vmem [#allocation2], %s202
        %p204 = pneg %p57
        %p205 = pneg %p54
        %s206 = sand.u32 %s72, 1
        %s207 = scalar_lea.sflag [#allocation6], %s206
        %s208 = sand.u32 %s72, 1
        %s209 = smul.addr %s208, 4
        %s210 = scalar_lea.vmem [#allocation5], %s209
        %p211 = pneg %p85
        %p212 = pneg %p82
        %p213 = pneg %p113
        %p214 = pneg %p110
        %s215 = sand.u32 %s100, 1
        %s216 = scalar_lea.sflag [#allocation4], %s215
        %s217 = sand.u32 %s100, 1
        %s218 = smul.addr %s217, 8
        %s219 = scalar_lea.vmem [#allocation7], %s218
        %s220 = smul.u32 2, %s27
        %s221 = smul.u32 2, %s27
        %v222 = vld [vmem:[%s185] sm:$0xf]
        %v223 = vld [vmem:[%s194] sm:$0xf]
        %v224 = vmul.f32 %v223, 0.05
        %v225 = vsub.f32 %v222, %v224
        %v226 = vmul.f32 %v225, %v225
        %v229 = vunpack.c.l.s4 1983009808
        %v230 = vunpack.c.0.s8 %v229
        %v231 = vlaneseq
        %v232 = vshrl.u32 %v231, 7
        %v233 = vsub.s32 %v230, %v232
        %v234 = vrot.slane %v226, %v233
        %v235 = vcombine.high %v234, %v234
        %vm238 = vcmask 1041408
        %v239 = vsel %vm238, %v234, 0.0
        %v240 = vrot.slane %v239, 4
        %v241 = vadd.f32 %v239, %v240
        %v242 = vrot.slane %v241, 2
        %v243 = vadd.f32 %v241, %v242
        %v244 = vrot.slane %v243, 1
        %v245 = vadd.f32 %v243, %v244
        %v246 = vsel %vm238, %v235, 0.0
        %v247 = vrot.slane %v246, 4
        %v248 = vadd.f32 %v246, %v247
        %v249 = vrot.slane %v248, 2
        %v250 = vadd.f32 %v248, %v249
        %v251 = vrot.slane %v250, 1
        %v252 = vadd.f32 %v250, %v251
        %v253 = vrsqrt.pop %v245
        %v254 = vmul.f32 %v245, %v253
        %vm255 = vcmp.eq.f32.partialorder %v245, inf
        %v256 = vsel %vm255, %v245, %v254
        %vm257 = vcmp.eq.f32.partialorder %v245, 0.0
        %v258 = vand.u32 %v245, 2147483648
        %v259 = vsel %vm257, %v258, %v256
        %v260 = vrsqrt.pop %v252
        %v261 = vmul.f32 %v252, %v260
        %vm262 = vcmp.eq.f32.partialorder %v252, inf
        %v263 = vsel %vm262, %v252, %v261
        %vm264 = vcmp.eq.f32.partialorder %v252, 0.0
        %v265 = vand.u32 %v252, 2147483648
        %v266 = vsel %vm264, %v265, %v263
        %vm267 = vcmask 1040384
        %v268 = vsel %vm267, %v259, 0.0
        %v269 = vsel %vm267, %v266, 0.0
        %v270 = vadd.f32 %v268, %v269
        %271 = vadd.xlane.f32.xlu0 %v270
        %v272 = vpop.xlane.xlu0 %271
        %v273 = vrot.slane %v272, 4
        %v274 = vadd.f32 %v272, %v273
        %v275 = vrot.slane %v274, 2
        %v276 = vadd.f32 %v274, %v275
        %v277 = vrot.slane %v276, 1
        %v278 = vadd.f32 %v276, %v277
        %s279 = vtos %v278
        %v280 = vstv %s279
        %281 = vst [vmem:[%s219] sm:$0xff] %v280
        %s282 = sand.u32 %s100, 1
        %s283 = scalar_lea.sflag [#allocation4], %s282
        %s284 = sand.u32 %s100, 1
        %s285 = smul.addr %s284, 8
        %s286 = scalar_lea.vmem [#allocation7], %s285
        // Predicated region
        $region37: #{tpu_custom_call.1} parent=27 // pred_check
          %p287 = pneg %p110
        $region38: #{tpu_custom_call.1} parent=27 // pred_check_branch
          %289 = sbr.rel (%p287) target = $region40
        $region39: #{tpu_custom_call.1} parent=27 // pred_region
          %s291 = ssub.s32 128, 128
          %292 = vsyncadd %s283, %s291
          %s293 = sadd.s32 %s27, %s26
          %s294 = smul.addr %s293, 128
          %s295 = scalar_lea.hbm %s2, %s294
          %s297 = sshll.u32 %s286, 4
          %s298 = int_to_ptr.vmem [resolvable:$true] %s297
          %300 = dma.vmem_to_hbm [thread:$0]  %s298, 128, %s295, %s283
        $region40: #{tpu_custom_call.1} parent=27 // pred_fallthru
          _
      $region28: #{tpu_custom_call.1} parent=5 // pred_fallthru
        _
      %p301 = scmp.le.s32.totalorder 2, %s17
      // Predicated region
      $region41: #{tpu_custom_call.1} parent=5 // pred_check
        %p302 = pneg %p301
      $region42: #{tpu_custom_call.1} parent=5 // pred_check_branch
        %304 = sbr.rel (%p302) target = $region44
      $region43: #{tpu_custom_call.1} parent=5 // pred_region
        %s305 = ssub.s32 %s17, 2
        // Predicated region
        $region45: #{tpu_custom_call.1} parent=43 // pred_check
          %p306 = pneg %p116
        $region46: #{tpu_custom_call.1} parent=43 // pred_check_branch
          %308 = sbr.rel (%p306) target = $region48
        $region47: #{tpu_custom_call.1} parent=43 // pred_region
          %s309 = sand.u32 %s101, 1
          %s310 = scalar_lea.sflag [#allocation4], %s309
          %s311 = sand.u32 %s101, 1
          %s312 = smul.addr %s311, 8
          %s313 = scalar_lea.vmem [#allocation7], %s312
          %314 = dma.done %s310, 128
        $region48: #{tpu_custom_call.1} parent=43 // pred_fallthru
          _
      $region44: #{tpu_custom_call.1} parent=5 // pred_fallthru
        _
    $region6: #{tpu_custom_call.1} parent=1 // loop_footer
      %s21 = sadd.s32 1, %s17
    $region7: #{tpu_custom_call.1} parent=1 // loop_footer_branch
      %16 = sbr.rel target = $region3
    $region8: #{tpu_custom_call.1} parent=1 // loop_exit
      _
    %315 = vsyncpa [#allocation3], 1
    %s316 = scalar_lea.sflag [#allocation3], 1
    %317 = vsyncpa %s316, 1
    %318 = vsyncpa [#allocation6], 1
    %s319 = scalar_lea.sflag [#allocation6], 1
    %320 = vsyncpa %s319, 1
    %321 = vsyncpa [#allocation4], 1
    %s322 = scalar_lea.sflag [#allocation4], 1
    %323 = vsyncpa %s322, 1

</llo_original>
